<compile_context>
chip_gen: v7x
topology: tpu7x:2x2x1
jax: 0.10.0
libtpu: 0.0.40
codegen_flags: <defaults>
</compile_context>

<pallas_src>
import math

import jax
import jax.numpy as jnp
from jax.experimental import pallas as pl
from jax.experimental.pallas import tpu as pltpu


def _copy_kernel(x_ref, o_ref):
    # Lane-dense full-block copy; the flatten itself is a metadata-only
    # reshape done in the wrapper.
    o_ref[...] = x_ref[...]


def _divisors(n):
    ds = set()
    i = 1
    while i * i <= n:
        if n % i == 0:
            ds.add(i)
            ds.add(n // i)
        i += 1
    return ds


# dtype-aware sublane packing: f32 -> 8 rows/vreg, bf16 -> 16, int8/fp8 -> 32.
_SUBLANE_ALIGN = {4: 8, 2: 16, 1: 32}


def _pick_lanes(total, itemsize, align, max_block_bytes, max_lanes=32768):
    """Largest multiple of 128 dividing `total`, capped so that even a minimal
    (align, L) block stays within the per-block byte budget."""
    cap = min(total, max_lanes, max_block_bytes // (align * itemsize))
    cap -= cap % 128
    L = cap
    while L >= 128:
        if total % L == 0:
            return L
        L -= 128
    return None


def _pick_rows(R, align, row_bytes, *, max_block_bytes, min_block_bytes,
               min_grid_steps):
    """Rows per block for a (R, L) slab with row_bytes bytes per row.

    Preference order:
      1. whole slab in one block if it fits the byte budget;
      2. largest exact divisor of R (multiple of `align`) whose block is in
         [min_block_bytes, max_block_bytes] and leaves >= min_grid_steps grid
         steps (keeps both v7x TensorCores fed and the pipeline buffering);
      3. largest exact divisor within the byte budget (fewest steps);
      4. a non-dividing aligned tile within the budget (Pallas masks the tail
         block) — the hard cap that keeps awkward/prime extents from blowing
         the scoped VMEM limit.
    """
    if R * row_bytes <= max_block_bytes:
        return R
    best_div = None
    for t in sorted(_divisors(R), reverse=True):
        if t % align != 0 or t * row_bytes > max_block_bytes:
            continue
        if t * row_bytes >= min_block_bytes and pl.cdiv(R, t) >= min_grid_steps:
            return t
        if best_div is None:
            best_div = t
    if best_div is not None:
        return best_div
    budget_rows = max(1, max_block_bytes // row_bytes)
    return max(align, (budget_rows // align) * align)


def flatten(x, *, max_block_bytes=4 << 20, min_block_bytes=512 << 10,
            min_grid_steps=8):
    """Pallas equivalent of Flatten.forward: x.view(-1, prod(x.shape[1:]))."""
    B = x.shape[0]
    F = math.prod(x.shape[1:])
    total = B * F
    itemsize = jnp.dtype(x.dtype).itemsize
    align = _SUBLANE_ALIGN.get(itemsize, 8)

    # Row-major flatten of a contiguous array is metadata-only in XLA, so
    # present the kernel with the most DMA/lane-friendly 2-D slab (R, L).
    L = _pick_lanes(total, itemsize, align, max_block_bytes)
    if L is None:
        # Lane-unfriendly total (not a multiple of 128): keep the natural
        # (B, F) layout; stores may be masked but the copy is still correct.
        # TODO(synk): shapes with a huge lane-unfriendly F would want 2-D
        # tiling here; irrelevant for NCHW feature maps.
        R, L = B, F
    else:
        R = total // L

    row_bytes = L * itemsize
    tr = _pick_rows(R, align, row_bytes,
                    max_block_bytes=max_block_bytes,
                    min_block_bytes=min_block_bytes,
                    min_grid_steps=min_grid_steps)
    block_bytes = tr * row_bytes

    # in + out, double-buffered, plus headroom; clamp to stay well inside
    # physical VMEM on all chips (v7x has only 64 MiB per TensorCore).
    vmem_limit = 2 * 2 * block_bytes + (4 << 20)
    vmem_limit = max(16 << 20, min(vmem_limit, 64 << 20))

    x2 = jnp.reshape(x, (R, L))
    out2 = pl.pallas_call(
        _copy_kernel,
        out_shape=jax.ShapeDtypeStruct((R, L), x.dtype),
        grid=(pl.cdiv(R, tr),),
        in_specs=[pl.BlockSpec((tr, L), lambda i: (i, 0))],
        out_specs=pl.BlockSpec((tr, L), lambda i: (i, 0)),
        compiler_params=pltpu.CompilerParams(
            dimension_semantics=("parallel",),
            vmem_limit_bytes=vmem_limit,
        ),
    )(x2)
    return jnp.reshape(out2, (B, F))


if __name__ == "__main__":
    key = jax.random.PRNGKey(0)
    k1, k2, k3, k4 = jax.random.split(key, 4)

    # 1. Shape implied by the module's usage (small NCHW feature map).
    x1 = jax.random.normal(k1, (2, 4, 16, 16), dtype=jnp.float32)
    o1 = jax.block_until_ready(flatten(x1))
    assert o1.shape == (2, 4 * 16 * 16), o1.shape
    assert o1.dtype == x1.dtype, o1.dtype
    assert jnp.array_equal(o1, jnp.reshape(x1, (2, -1)))

    # 2. Multi-block, exactly-tiled grid (shrunken budgets so a small test
    #    array still produces several pipeline steps).
    x2 = jax.random.normal(k2, (64, 8, 32, 32), dtype=jnp.float32)
    o2 = jax.block_until_ready(
        flatten(x2, max_block_bytes=256 << 10, min_block_bytes=32 << 10))
    assert jnp.array_equal(o2, jnp.reshape(x2, (64, -1)))

    # 3. Non-dividing row count -> cdiv grid with a masked tail block.
    x3 = jax.random.normal(k3, (8, 9, 16, 16), dtype=jnp.float32)
    o3 = jax.block_until_ready(
        flatten(x3, max_block_bytes=16 << 10, min_block_bytes=4 << 10))
    assert jnp.array_equal(o3, jnp.reshape(x3, (8, -1)))

    # 4. Lane-unfriendly total (falls back to the (B, F) layout).
    x4 = jax.random.normal(k4, (2, 5, 3, 7), dtype=jnp.float32)
    o4 = jax.block_until_ready(flatten(x4))
    assert jnp.array_equal(o4, jnp.reshape(x4, (2, -1)))

    # 5. Sub-32-bit dtype (exercises the dtype-aware sublane alignment).
    x5 = jax.random.normal(k1, (4, 8, 16, 16), dtype=jnp.bfloat16)
    o5 = jax.block_until_ready(flatten(x5))
    assert jnp.array_equal(o5, jnp.reshape(x5, (4, -1)))

    print("KERNEL_OK")
</pallas_src>

<mosaic_0001>
module attributes {stable_mosaic.version = 11 : i64} {
  func.func @_copy_kernel(%arg0: i32, %arg1: memref<1x2048xf32, #tpu.memory_space<vmem>>, %arg2: memref<1x2048xf32, #tpu.memory_space<vmem>>) attributes {dimension_semantics = [#tpu.dimension_semantics<parallel>], iteration_bounds = array<i64: 1>, scalar_prefetch = 0 : i64, scratch_operands = 0 : i64, tpu.core_type = #tpu.core_type<tc>, window_params = [{transform_indices = @transform_0, window_bounds = array<i64: 1, 2048>}, {transform_indices = @transform_1, window_bounds = array<i64: 1, 2048>}]} {
    %c0 = arith.constant 0 : index
    %c0_0 = arith.constant 0 : index
    %0 = vector.load %arg1[%c0, %c0_0] : memref<1x2048xf32, #tpu.memory_space<vmem>>, vector<1x2048xf32>
    %c0_1 = arith.constant 0 : index
    %c0_2 = arith.constant 0 : index
    %1 = vector.load %arg2[%c0_1, %c0_2] : memref<1x2048xf32, #tpu.memory_space<vmem>>, vector<1x2048xf32>
    tpu.vector_store %arg2[%c0_1, %c0_2], %0 {strides = array<i32>} : memref<1x2048xf32, #tpu.memory_space<vmem>>, vector<1x2048xf32>,
    return
  }
  func.func @transform_0(%arg0: i32) -> (i32, i32) {
    %c0_i32 = arith.constant 0 : i32
    %c0_i32_0 = arith.constant 0 : i32
    return %arg0, %c0_i32 : i32, i32
  }
  func.func @transform_1(%arg0: i32) -> (i32, i32) {
    %c0_i32 = arith.constant 0 : i32
    %c0_i32_0 = arith.constant 0 : i32
    return %arg0, %c0_i32 : i32, i32
  }
}

</mosaic_0001>

<llo_original>
// kernel: tpu_custom_call.1
$region0: #{tpu_custom_call.1}
  #allocation0 [shape = 'u32[]', space=smem, size = 0x4, offset = 0x4, fixed_abs, tag = 'smem constant byte address 0x4 - core index']
  #allocation1 [shape = 'u32[144,128]{1,0:T(1,128)}', space=vmem, size = 0x12000, scoped, tag = 'internal scratch']
  %s0 = inlined_call_operand.hbm [shape: f32[1,2048], index: 0, kind: input, shape index: {}]
  %s1 = inlined_call_operand.hbm [shape: f32[1,2048], index: 1, kind: output, shape index: {}]
  %s2 = sld [smem:[#allocation0]]
  $region18: #{tpu_custom_call.1} parent=0
    _
  %s4 = ssub.s32 1, %s2
  %s5 = scalar_select 0, %s4, %s2
  $region1: #{tpu_custom_call.1} parent=0
    #allocation2 [shape = 'u8[8192]{0}', space=vmem, size = 0x2000, scoped, tag = 'input window, operand 0, single buffered']
    #allocation3 [shape = 's32[1]{0}', space=sflag, size = 0x4, scoped, tag = 'scoped memory for tpu_custom_call.1']
    #allocation4 [shape = 's32[1]{0}', space=sflag, size = 0x4, scoped, tag = 'scoped memory for tpu_custom_call.1']
    #allocation5 [shape = 'u8[8192]{0}', space=vmem, size = 0x2000, scoped, tag = 'output window, operand 0, single buffered']
    %6 = vsyncpa [#allocation3], 0
    %7 = vsyncpa [#allocation4], 0
    // Predicated region
    $region2: #{tpu_custom_call.1} parent=1 // pred_check
      _
    $region3: #{tpu_custom_call.1} parent=1 // pred_check_branch
      %9 = sbr.rel (0) target = $region5
    $region4: #{tpu_custom_call.1} parent=1 // pred_region
      %s11 = ssub.s32 256, 256
      %12 = vsyncadd [#allocation3], %s11
      %s14 = sshll.u32 [#allocation2], 4
      %s15 = int_to_ptr.vmem [resolvable:$true] %s14
      %17 = dma.hbm_to_vmem [thread:$0]  %s0, 256, %s15, [#allocation3]
    $region5: #{tpu_custom_call.1} parent=1 // pred_fallthru
      _
    // Predicated region
    $region6: #{tpu_custom_call.1} parent=1 // pred_check
      _
    $region7: #{tpu_custom_call.1} parent=1 // pred_check_branch
      %19 = sbr.rel (0) target = $region9
    $region8: #{tpu_custom_call.1} parent=1 // pred_region
      %20 = dma.done [#allocation3], 256
    $region9: #{tpu_custom_call.1} parent=1 // pred_fallthru
      _
    %v21 = vld [vmem:[#allocation2] sm:$0xff]
    %v22 = vld [vmem:[#allocation2 + $0x8] sm:$0xff]
    %23 = vst [vmem:[#allocation5] sm:$0xff] %v21
    %24 = vst [vmem:[#allocation5 + $0x8] sm:$0xff] %v22
    // Predicated region
    $region10: #{tpu_custom_call.1} parent=1 // pred_check
      _
    $region11: #{tpu_custom_call.1} parent=1 // pred_check_branch
      %26 = sbr.rel (0) target = $region13
    $region12: #{tpu_custom_call.1} parent=1 // pred_region
      %s28 = ssub.s32 256, 256
      %29 = vsyncadd [#allocation4], %s28
      %s31 = sshll.u32 [#allocation5], 4
      %s32 = int_to_ptr.vmem [resolvable:$true] %s31
      %34 = dma.vmem_to_hbm [thread:$0]  %s32, 256, %s1, [#allocation4]
    $region13: #{tpu_custom_call.1} parent=1 // pred_fallthru
      _
    // Predicated region
    $region14: #{tpu_custom_call.1} parent=1 // pred_check
      _
    $region15: #{tpu_custom_call.1} parent=1 // pred_check_branch
      %36 = sbr.rel (0) target = $region17
    $region16: #{tpu_custom_call.1} parent=1 // pred_region
      %37 = dma.done [#allocation4], 256
    $region17: #{tpu_custom_call.1} parent=1 // pred_fallthru
      _
    %38 = vsyncpa [#allocation3], 1
    %39 = vsyncpa [#allocation4], 1

</llo_original>
